<compile_context>
chip_gen: v6e
topology: v6e:2x2x1
jax: 0.10.0
libtpu: 0.0.40
codegen_flags: <defaults>
</compile_context>

<pallas_src>
import functools

import jax
import jax.numpy as jnp
from jax.experimental import pallas as pl
from jax.experimental.pallas import tpu as pltpu


def _round_up(x, m):
    return (x + m - 1) // m * m


# ------------------------------ Pallas kernel ------------------------------ #

def _fused_mlp_kernel(*args, n_layers: int, has_arch: bool):
    """Whole-MLP forward on one [TM, *] row block of the batch.

    Ref order (has_arch=True):
      x, arch_flat, Wa, ba, W0x, W0a, b0, (W_i, b_i for i=1..n_layers-1), out
    Ref order (has_arch=False):
      x, W0, b0, (W_i, b_i for i=1..n_layers-1), out
    Weights are [in, out]; biases are [1, out].
    """
    refs = list(args)
    o_ref = refs.pop()                       # single output, no scratch

    x_ref = refs.pop(0)
    x = x_ref[...]

    if has_arch:
        arch_ref = refs.pop(0)
        wa_ref = refs.pop(0)
        ba_ref = refs.pop(0)
        w0x_ref = refs.pop(0)
        w0a_ref = refs.pop(0)
        b0_ref = refs.pop(0)
        # arch_output linear (no ReLU), kept entirely on-chip.
        arch_out = (jnp.dot(arch_ref[...], wa_ref[...],
                            preferred_element_type=jnp.float32)
                    + ba_ref[...])
        # Layer 0 on concat([x, arch_out]) == split-weight form (no concat).
        h = (jnp.dot(x, w0x_ref[...], preferred_element_type=jnp.float32)
             + jnp.dot(arch_out.astype(w0a_ref.dtype), w0a_ref[...],
                       preferred_element_type=jnp.float32)
             + b0_ref[...])
    else:
        w0_ref = refs.pop(0)
        b0_ref = refs.pop(0)
        h = (jnp.dot(x, w0_ref[...], preferred_element_type=jnp.float32)
             + b0_ref[...])

    if n_layers > 1:                         # ReLU after every Linear but last
        h = jnp.maximum(h, 0.0)

    for li in range(1, n_layers):
        w_ref = refs.pop(0)
        b_ref = refs.pop(0)
        h = (jnp.dot(h.astype(w_ref.dtype), w_ref[...],
                     preferred_element_type=jnp.float32)
             + b_ref[...])
        if li < n_layers - 1:
            h = jnp.maximum(h, 0.0)

    o_ref[...] = h.astype(o_ref.dtype)


# ------------------------------ Kernel wrapper ------------------------------ #

def fused_mlp(params, x, arch_flat=None, *, max_tm=256):
    """Single fused pallas_call for the whole MLP forward."""
    has_arch = arch_flat is not None
    B, C0 = x.shape
    n_layers = len(params["layers"])
    n_out = params["layers"][-1][0].shape[1]
    dtype = x.dtype

    # Tile only the batch (M) axis; weights stay full-extent & VMEM-resident.
    if B <= max_tm:
        tm = _round_up(B, 8)
        b_pad = tm
    else:
        tm = max_tm
        b_pad = _round_up(B, tm)
    pad = b_pad - B
    if pad:
        x = jnp.pad(x, ((0, pad), (0, 0)))
        if has_arch:
            arch_flat = jnp.pad(arch_flat, ((0, pad), (0, 0)))

    row = lambda i: (i, 0)       # block row i along the batch axis
    full = lambda i: (0, 0)      # same whole block every grid step (resident)

    inputs = [x]
    in_specs = [pl.BlockSpec((tm, C0), row)]

    if has_arch:
        wa, ba = params["arch_output"]          # [n*D, C0], [1, C0]
        w0, b0 = params["layers"][0]            # [2*C0, C1], [1, C1]
        w0x, w0a = w0[:C0], w0[C0:]             # split-weight form of layer 0
        inputs += [arch_flat, wa, ba, w0x, w0a, b0]
        in_specs += [
            pl.BlockSpec((tm, arch_flat.shape[1]), row),
            pl.BlockSpec(wa.shape, full),
            pl.BlockSpec(ba.shape, full),
            pl.BlockSpec(w0x.shape, full),
            pl.BlockSpec(w0a.shape, full),
            pl.BlockSpec(b0.shape, full),
        ]
    else:
        w0, b0 = params["layers"][0]
        inputs += [w0, b0]
        in_specs += [pl.BlockSpec(w0.shape, full), pl.BlockSpec(b0.shape, full)]

    for w, b in params["layers"][1:]:
        inputs += [w, b]
        in_specs += [pl.BlockSpec(w.shape, full), pl.BlockSpec(b.shape, full)]

    kernel = functools.partial(_fused_mlp_kernel,
                               n_layers=n_layers, has_arch=has_arch)

    out = pl.pallas_call(
        kernel,
        out_shape=jax.ShapeDtypeStruct((b_pad, n_out), dtype),
        grid=(b_pad // tm,),
        in_specs=in_specs,
        out_specs=pl.BlockSpec((tm, n_out), row),
        compiler_params=pltpu.CompilerParams(
            dimension_semantics=("parallel",)),
    )(*inputs)
    return out[:B]


# --------------------------- Parameter creation ---------------------------- #

def _init_linear(key, in_f, out_f, dtype=jnp.float32):
    # Stored pre-transposed: W as [in, out], bias as [1, out].
    kw, kb = jax.random.split(key)
    bound = 1.0 / (in_f ** 0.5)
    w_t = jax.random.uniform(kw, (in_f, out_f), dtype, -bound, bound)
    b = jax.random.uniform(kb, (1, out_f), dtype, -bound, bound)
    return w_t, b


def make_mlp_params(key, channels, arch_sizes, arch_embed_dim):
    params = {}
    n_keys = (len(channels) - 1) + (len(arch_sizes) + 1 if arch_sizes is not None else 0)
    keys = jax.random.split(key, n_keys)
    ki = 0

    # nn.Sequential of Linear (+ReLU except after last)
    layer_params = []
    for i in range(len(channels) - 1):
        in_f = channels[i] * 2 if (i == 0 and arch_sizes is not None) else channels[i]
        layer_params.append(_init_linear(keys[ki], in_f, channels[i + 1]))
        ki += 1
    params["layers"] = layer_params

    if arch_sizes is not None:
        embeds = []
        for sz in arch_sizes:
            embeds.append(jax.random.normal(keys[ki], (sz, arch_embed_dim),
                                            jnp.float32))
            ki += 1
        params["arch_embed"] = embeds
        params["arch_output"] = _init_linear(
            keys[ki], arch_embed_dim * len(arch_sizes), channels[0])
        ki += 1
    return params


# ------------------------------ Forward pass ------------------------------- #

@jax.jit
def mlp_forward(params, x, arch=None):
    arch_flat = None
    if arch is not None and "arch_embed" in params:
        # Embedding lookups (JAX glue, fused under jit).
        feats = [jnp.take(t, arch[:, i], axis=0)
                 for i, t in enumerate(params["arch_embed"])]      # each [B, D]
        arch_flat = jnp.stack(feats, axis=1).reshape(x.shape[0], -1)  # b (n d)
    return fused_mlp(params, x, arch_flat)


# ---------------------------------- Main ----------------------------------- #

if __name__ == "__main__":
    channels = [32, 64, 32, 8]
    arch_sizes = [5, 7]
    arch_embed_dim = 16
    batch = 8

    root = jax.random.PRNGKey(0)
    kp, kx, ka = jax.random.split(root, 3)

    params = make_mlp_params(kp, channels, arch_sizes, arch_embed_dim)

    x = jax.random.normal(kx, (batch, channels[0]), jnp.float32)
    arch = jnp.stack(
        [jax.random.randint(jax.random.fold_in(ka, i), (batch,), 0, sz)
         for i, sz in enumerate(arch_sizes)],
        axis=1).astype(jnp.int32)                                  # [B, n_arch]

    out = mlp_forward(params, x, arch)
    out = jax.block_until_ready(out)

    # Pure-JAX reference check (same math as the PyTorch module, no Pallas).
    feats = [jnp.take(params["arch_embed"][i], arch[:, i], axis=0)
             for i in range(len(arch_sizes))]
    af = jnp.stack(feats, axis=1).reshape(batch, -1)
    wa, ba = params["arch_output"]
    af = af @ wa + ba                     # weights already [in, out]
    xr = jnp.concatenate([x, af], axis=1)
    nl = len(params["layers"])
    for i, (w, b) in enumerate(params["layers"]):
        xr = xr @ w + b
        if i < nl - 1:
            xr = jnp.maximum(xr, 0.0)

    assert out.shape == (batch, channels[-1])
    assert jnp.allclose(out, xr, atol=1e-4, rtol=1e-4)
    print("KERNEL_OK")
</pallas_src>

<mosaic_0001>
module attributes {stable_mosaic.version = 11 : i64} {
  func.func @_fused_mlp_kernel(%arg0: i32, %arg1: memref<8x32xf32, #tpu.memory_space<vmem>>, %arg2: memref<8x32xf32, #tpu.memory_space<vmem>>, %arg3: memref<32x32xf32, #tpu.memory_space<vmem>>, %arg4: memref<1x32xf32, #tpu.memory_space<vmem>>, %arg5: memref<32x64xf32, #tpu.memory_space<vmem>>, %arg6: memref<32x64xf32, #tpu.memory_space<vmem>>, %arg7: memref<1x64xf32, #tpu.memory_space<vmem>>, %arg8: memref<64x32xf32, #tpu.memory_space<vmem>>, %arg9: memref<1x32xf32, #tpu.memory_space<vmem>>, %arg10: memref<32x8xf32, #tpu.memory_space<vmem>>, %arg11: memref<1x8xf32, #tpu.memory_space<vmem>>, %arg12: memref<8x8xf32, #tpu.memory_space<vmem>>) attributes {dimension_semantics = [#tpu.dimension_semantics<parallel>], iteration_bounds = array<i64: 1>, scalar_prefetch = 0 : i64, scratch_operands = 0 : i64, tpu.core_type = #tpu.core_type<tc>, window_params = [{transform_indices = @transform_0, window_bounds = array<i64: 8, 32>}, {transform_indices = @transform_1, window_bounds = array<i64: 8, 32>}, {pipeline_mode = #tpu.pipeline_mode<synchronous>, transform_indices = @transform_2, window_bounds = array<i64: 32, 32>}, {pipeline_mode = #tpu.pipeline_mode<synchronous>, transform_indices = @transform_3, window_bounds = array<i64: 1, 32>}, {pipeline_mode = #tpu.pipeline_mode<synchronous>, transform_indices = @transform_4, window_bounds = array<i64: 32, 64>}, {pipeline_mode = #tpu.pipeline_mode<synchronous>, transform_indices = @transform_5, window_bounds = array<i64: 32, 64>}, {pipeline_mode = #tpu.pipeline_mode<synchronous>, transform_indices = @transform_6, window_bounds = array<i64: 1, 64>}, {pipeline_mode = #tpu.pipeline_mode<synchronous>, transform_indices = @transform_7, window_bounds = array<i64: 64, 32>}, {pipeline_mode = #tpu.pipeline_mode<synchronous>, transform_indices = @transform_8, window_bounds = array<i64: 1, 32>}, {pipeline_mode = #tpu.pipeline_mode<synchronous>, transform_indices = @transform_9, window_bounds = array<i64: 32, 8>}, {pipeline_mode = #tpu.pipeline_mode<synchronous>, transform_indices = @transform_10, window_bounds = array<i64: 1, 8>}, {transform_indices = @transform_11, window_bounds = array<i64: 8, 8>}]} {
    %c0 = arith.constant 0 : index
    %c0_0 = arith.constant 0 : index
    %0 = vector.load %arg1[%c0, %c0_0] : memref<8x32xf32, #tpu.memory_space<vmem>>, vector<8x32xf32>
    %c0_1 = arith.constant 0 : index
    %c0_2 = arith.constant 0 : index
    %1 = vector.load %arg2[%c0_1, %c0_2] : memref<8x32xf32, #tpu.memory_space<vmem>>, vector<8x32xf32>
    %c0_3 = arith.constant 0 : index
    %c0_4 = arith.constant 0 : index
    %2 = vector.load %arg3[%c0_3, %c0_4] : memref<32x32xf32, #tpu.memory_space<vmem>>, vector<32x32xf32>
    %cst = arith.constant dense<0.000000e+00> : vector<8x32xf32>
    %3 = tpu.matmul %1, %2, %cst {dimension_numbers = #tpu.dot_dimension_numbers<[1], [0], [0], [1], [0, 0, 1, 1], [], []>} : vector<8x32xf32>, vector<32x32xf32>, vector<8x32xf32> -> vector<8x32xf32>
    %c0_5 = arith.constant 0 : index
    %c0_6 = arith.constant 0 : index
    %4 = vector.load %arg4[%c0_5, %c0_6] : memref<1x32xf32, #tpu.memory_space<vmem>>, vector<1x32xf32>
    %5 = vector.broadcast %4 : vector<1x32xf32> to vector<8x32xf32>
    %6 = arith.addf %3, %5 : vector<8x32xf32>
    %c0_7 = arith.constant 0 : index
    %c0_8 = arith.constant 0 : index
    %7 = vector.load %arg5[%c0_7, %c0_8] : memref<32x64xf32, #tpu.memory_space<vmem>>, vector<32x64xf32>
    %cst_9 = arith.constant dense<0.000000e+00> : vector<8x64xf32>
    %8 = tpu.matmul %0, %7, %cst_9 {dimension_numbers = #tpu.dot_dimension_numbers<[1], [0], [0], [1], [0, 0, 1, 1], [], []>} : vector<8x32xf32>, vector<32x64xf32>, vector<8x64xf32> -> vector<8x64xf32>
    %c0_10 = arith.constant 0 : index
    %c0_11 = arith.constant 0 : index
    %9 = vector.load %arg6[%c0_10, %c0_11] : memref<32x64xf32, #tpu.memory_space<vmem>>, vector<32x64xf32>
    %cst_12 = arith.constant dense<0.000000e+00> : vector<8x64xf32>
    %10 = tpu.matmul %6, %9, %cst_12 {dimension_numbers = #tpu.dot_dimension_numbers<[1], [0], [0], [1], [0, 0, 1, 1], [], []>} : vector<8x32xf32>, vector<32x64xf32>, vector<8x64xf32> -> vector<8x64xf32>
    %11 = arith.addf %8, %10 : vector<8x64xf32>
    %c0_13 = arith.constant 0 : index
    %c0_14 = arith.constant 0 : index
    %12 = vector.load %arg7[%c0_13, %c0_14] : memref<1x64xf32, #tpu.memory_space<vmem>>, vector<1x64xf32>
    %13 = vector.broadcast %12 : vector<1x64xf32> to vector<8x64xf32>
    %14 = arith.addf %11, %13 : vector<8x64xf32>
    %cst_15 = arith.constant 0.000000e+00 : f32
    %15 = vector.broadcast %cst_15 : f32 to vector<8x64xf32>
    %16 = arith.maximumf %14, %15 : vector<8x64xf32>
    %c0_16 = arith.constant 0 : index
    %c0_17 = arith.constant 0 : index
    %17 = vector.load %arg8[%c0_16, %c0_17] : memref<64x32xf32, #tpu.memory_space<vmem>>, vector<64x32xf32>
    %cst_18 = arith.constant dense<0.000000e+00> : vector<8x32xf32>
    %18 = tpu.matmul %16, %17, %cst_18 {dimension_numbers = #tpu.dot_dimension_numbers<[1], [0], [0], [1], [0, 0, 1, 1], [], []>} : vector<8x64xf32>, vector<64x32xf32>, vector<8x32xf32> -> vector<8x32xf32>
    %c0_19 = arith.constant 0 : index
    %c0_20 = arith.constant 0 : index
    %19 = vector.load %arg9[%c0_19, %c0_20] : memref<1x32xf32, #tpu.memory_space<vmem>>, vector<1x32xf32>
    %20 = vector.broadcast %19 : vector<1x32xf32> to vector<8x32xf32>
    %21 = arith.addf %18, %20 : vector<8x32xf32>
    %cst_21 = arith.constant 0.000000e+00 : f32
    %22 = vector.broadcast %cst_21 : f32 to vector<8x32xf32>
    %23 = arith.maximumf %21, %22 : vector<8x32xf32>
    %c0_22 = arith.constant 0 : index
    %c0_23 = arith.constant 0 : index
    %24 = vector.load %arg10[%c0_22, %c0_23] : memref<32x8xf32, #tpu.memory_space<vmem>>, vector<32x8xf32>
    %cst_24 = arith.constant dense<0.000000e+00> : vector<8x8xf32>
    %25 = tpu.matmul %23, %24, %cst_24 {dimension_numbers = #tpu.dot_dimension_numbers<[1], [0], [0], [1], [0, 0, 1, 1], [], []>} : vector<8x32xf32>, vector<32x8xf32>, vector<8x8xf32> -> vector<8x8xf32>
    %c0_25 = arith.constant 0 : index
    %c0_26 = arith.constant 0 : index
    %26 = vector.load %arg11[%c0_25, %c0_26] : memref<1x8xf32, #tpu.memory_space<vmem>>, vector<1x8xf32>
    %27 = vector.broadcast %26 : vector<1x8xf32> to vector<8x8xf32>
    %28 = arith.addf %25, %27 : vector<8x8xf32>
    %c0_27 = arith.constant 0 : index
    %c0_28 = arith.constant 0 : index
    %29 = vector.load %arg12[%c0_27, %c0_28] : memref<8x8xf32, #tpu.memory_space<vmem>>, vector<8x8xf32>
    tpu.vector_store %arg12[%c0_27, %c0_28], %28 {strides = array<i32>} : memref<8x8xf32, #tpu.memory_space<vmem>>, vector<8x8xf32>,
    return
  }
  func.func @transform_0(%arg0: i32) -> (i32, i32) {
    %c0_i32 = arith.constant 0 : i32
    %c0_i32_0 = arith.constant 0 : i32
    return %arg0, %c0_i32 : i32, i32
  }
  func.func @transform_1(%arg0: i32) -> (i32, i32) {
    %c0_i32 = arith.constant 0 : i32
    %c0_i32_0 = arith.constant 0 : i32
    return %arg0, %c0_i32 : i32, i32
  }
  func.func @transform_2(%arg0: i32) -> (i32, i32) {
    %c0_i32 = arith.constant 0 : i32
    %c0_i32_0 = arith.constant 0 : i32
    %c0_i32_1 = arith.constant 0 : i32
    return %c0_i32, %c0_i32_0 : i32, i32
  }
  func.func @transform_3(%arg0: i32) -> (i32, i32) {
    %c0_i32 = arith.constant 0 : i32
    %c0_i32_0 = arith.constant 0 : i32
    %c0_i32_1 = arith.constant 0 : i32
    return %c0_i32, %c0_i32_0 : i32, i32
  }
  func.func @transform_4(%arg0: i32) -> (i32, i32) {
    %c0_i32 = arith.constant 0 : i32
    %c0_i32_0 = arith.constant 0 : i32
    %c0_i32_1 = arith.constant 0 : i32
    return %c0_i32, %c0_i32_0 : i32, i32
  }
  func.func @transform_5(%arg0: i32) -> (i32, i32) {
    %c0_i32 = arith.constant 0 : i32
    %c0_i32_0 = arith.constant 0 : i32
    %c0_i32_1 = arith.constant 0 : i32
    return %c0_i32, %c0_i32_0 : i32, i32
  }
  func.func @transform_6(%arg0: i32) -> (i32, i32) {
    %c0_i32 = arith.constant 0 : i32
    %c0_i32_0 = arith.constant 0 : i32
    %c0_i32_1 = arith.constant 0 : i32
    return %c0_i32, %c0_i32_0 : i32, i32
  }
  func.func @transform_7(%arg0: i32) -> (i32, i32) {
    %c0_i32 = arith.constant 0 : i32
    %c0_i32_0 = arith.constant 0 : i32
    %c0_i32_1 = arith.constant 0 : i32
    return %c0_i32, %c0_i32_0 : i32, i32
  }
  func.func @transform_8(%arg0: i32) -> (i32, i32) {
    %c0_i32 = arith.constant 0 : i32
    %c0_i32_0 = arith.constant 0 : i32
    %c0_i32_1 = arith.constant 0 : i32
    return %c0_i32, %c0_i32_0 : i32, i32
  }
  func.func @transform_9(%arg0: i32) -> (i32, i32) {
    %c0_i32 = arith.constant 0 : i32
    %c0_i32_0 = arith.constant 0 : i32
    %c0_i32_1 = arith.constant 0 : i32
    return %c0_i32, %c0_i32_0 : i32, i32
  }
  func.func @transform_10(%arg0: i32) -> (i32, i32) {
    %c0_i32 = arith.constant 0 : i32
    %c0_i32_0 = arith.constant 0 : i32
    %c0_i32_1 = arith.constant 0 : i32
    return %c0_i32, %c0_i32_0 : i32, i32
  }
  func.func @transform_11(%arg0: i32) -> (i32, i32) {
    %c0_i32 = arith.constant 0 : i32
    %c0_i32_0 = arith.constant 0 : i32
    return %arg0, %c0_i32 : i32, i32
  }
}

</mosaic_0001>

<llo_original>
// kernel: mlp_forward.1
$region0: #{mlp_forward.1}
  #allocation0 [shape = 'u32[]', space=smem, size = 0x4, offset = 0x4, fixed_abs, tag = 'smem constant byte address 0x4 - core index']
  #allocation1 [shape = 'u32[144,128]{1,0:T(1,128)}', space=vmem, size = 0x12000, scoped, tag = 'internal scratch']
  %s0 = inlined_call_operand.vmem [shape: f32[8,32], index: 0, kind: input, shape index: {}]
  %s1 = inlined_call_operand.vmem [shape: f32[8,32], index: 1, kind: input, shape index: {}]
  %s2 = inlined_call_operand.vmem [shape: f32[32,32], index: 2, kind: input, shape index: {}]
  %s3 = inlined_call_operand.vmem [shape: f32[1,32], index: 3, kind: input, shape index: {}]
  %s4 = inlined_call_operand.vmem [shape: f32[32,64], index: 4, kind: input, shape index: {}]
  %s5 = inlined_call_operand.vmem [shape: f32[32,64], index: 5, kind: input, shape index: {}]
  %s6 = inlined_call_operand.vmem [shape: f32[1,64], index: 6, kind: input, shape index: {}]
  %s7 = inlined_call_operand.vmem [shape: f32[64,32], index: 7, kind: input, shape index: {}]
  %s8 = inlined_call_operand.vmem [shape: f32[1,32], index: 8, kind: input, shape index: {}]
  %s9 = inlined_call_operand.vmem [shape: f32[32,8], index: 9, kind: input, shape index: {}]
  %s10 = inlined_call_operand.vmem [shape: f32[1,8], index: 10, kind: input, shape index: {}]
  %s11 = inlined_call_operand.hbm [shape: f32[8,8], index: 11, kind: output, shape index: {}]
  %s12 = sld [smem:[#allocation0]]
  $region54: #{mlp_forward.1} parent=0
    _
  %s14 = ssub.s32 1, %s12
  %s15 = scalar_select 0, %s14, %s12
  $region1: #{mlp_forward.1} parent=0
    #allocation2 [shape = 'u8[4096]{0}', space=vmem, size = 0x1000, scoped, tag = 'output window, operand 0, single buffered']
    #allocation3 [shape = 's32[1]{0}', space=sflag, size = 0x4, scoped, tag = 'scoped memory for mlp_forward.1']
    %16 = vsyncpa [#allocation3], 0
    // Predicated region
    $region2: #{mlp_forward.1} parent=1 // pred_check
      _
    $region3: #{mlp_forward.1} parent=1 // pred_check_branch
      %18 = sbr.rel (0) target = $region5
    $region4: #{mlp_forward.1} parent=1 // pred_region
      _
    $region5: #{mlp_forward.1} parent=1 // pred_fallthru
      _
    // Predicated region
    $region6: #{mlp_forward.1} parent=1 // pred_check
      _
    $region7: #{mlp_forward.1} parent=1 // pred_check_branch
      %20 = sbr.rel (0) target = $region9
    $region8: #{mlp_forward.1} parent=1 // pred_region
      _
    $region9: #{mlp_forward.1} parent=1 // pred_fallthru
      _
    // Predicated region
    $region10: #{mlp_forward.1} parent=1 // pred_check
      _
    $region11: #{mlp_forward.1} parent=1 // pred_check_branch
      %22 = sbr.rel (0) target = $region13
    $region12: #{mlp_forward.1} parent=1 // pred_region
      _
    $region13: #{mlp_forward.1} parent=1 // pred_fallthru
      _
    // Predicated region
    $region14: #{mlp_forward.1} parent=1 // pred_check
      _
    $region15: #{mlp_forward.1} parent=1 // pred_check_branch
      %24 = sbr.rel (0) target = $region17
    $region16: #{mlp_forward.1} parent=1 // pred_region
      _
    $region17: #{mlp_forward.1} parent=1 // pred_fallthru
      _
    // Predicated region
    $region18: #{mlp_forward.1} parent=1 // pred_check
      _
    $region19: #{mlp_forward.1} parent=1 // pred_check_branch
      %26 = sbr.rel (0) target = $region21
    $region20: #{mlp_forward.1} parent=1 // pred_region
      _
    $region21: #{mlp_forward.1} parent=1 // pred_fallthru
      _
    // Predicated region
    $region22: #{mlp_forward.1} parent=1 // pred_check
      _
    $region23: #{mlp_forward.1} parent=1 // pred_check_branch
      %28 = sbr.rel (0) target = $region25
    $region24: #{mlp_forward.1} parent=1 // pred_region
      _
    $region25: #{mlp_forward.1} parent=1 // pred_fallthru
      _
    // Predicated region
    $region26: #{mlp_forward.1} parent=1 // pred_check
      _
    $region27: #{mlp_forward.1} parent=1 // pred_check_branch
      %30 = sbr.rel (0) target = $region29
    $region28: #{mlp_forward.1} parent=1 // pred_region
      _
    $region29: #{mlp_forward.1} parent=1 // pred_fallthru
      _
    // Predicated region
    $region30: #{mlp_forward.1} parent=1 // pred_check
      _
    $region31: #{mlp_forward.1} parent=1 // pred_check_branch
      %32 = sbr.rel (0) target = $region33
    $region32: #{mlp_forward.1} parent=1 // pred_region
      _
    $region33: #{mlp_forward.1} parent=1 // pred_fallthru
      _
    // Predicated region
    $region34: #{mlp_forward.1} parent=1 // pred_check
      _
    $region35: #{mlp_forward.1} parent=1 // pred_check_branch
      %34 = sbr.rel (0) target = $region37
    $region36: #{mlp_forward.1} parent=1 // pred_region
      _
    $region37: #{mlp_forward.1} parent=1 // pred_fallthru
      _
    // Predicated region
    $region38: #{mlp_forward.1} parent=1 // pred_check
      _
    $region39: #{mlp_forward.1} parent=1 // pred_check_branch
      %36 = sbr.rel (0) target = $region41
    $region40: #{mlp_forward.1} parent=1 // pred_region
      _
    $region41: #{mlp_forward.1} parent=1 // pred_fallthru
      _
    // Predicated region
    $region42: #{mlp_forward.1} parent=1 // pred_check
      _
    $region43: #{mlp_forward.1} parent=1 // pred_check_branch
      %38 = sbr.rel (0) target = $region45
    $region44: #{mlp_forward.1} parent=1 // pred_region
      _
    $region45: #{mlp_forward.1} parent=1 // pred_fallthru
      _
    %v39 = vld [vmem:[%s0] sm:$0xff]
    %v40 = vld [vmem:[%s1] sm:$0xff]
    %v41 = vld [vmem:[%s2] sm:$0xff]
    %v42 = vld [vmem:[%s2 + $0x8] sm:$0xff]
    %v43 = vld [vmem:[%s2 + $0x10] sm:$0xff]
    %v44 = vld [vmem:[%s2 + $0x18] sm:$0xff]
    %v45 = vld [vmem:[%s3] sm:$0x1]
    %v47 = vlaneseq
    %v48 = vshrl.u32 %v47, 7
    %v49 = vsub.s32 0, %v48
    %v50 = vrot.slane %v45, %v49
    %vm52 = vcmask 261120
    %v54 = vsel %vm52, %v40, 0
    %56 = vmatprep.subr.mxu0 0.0
    %57 = vmatpush1.msra.mxu0 0.0
    %58 = vmatprep.subr.mxu0 0.0
    %59 = vmatpush1.msra.mxu0 0.0
    %60 = vmatprep.subr.mxu0 0.0
    %61 = vmatpush1.msra.mxu0 0.0
    %62 = vmatprep.subr.mxu0 0.0
    %63 = vmatpush1.msra.mxu0 0.0
    %64 = vmatprep.subr.mxu0 0.0
    %65 = vmatpush1.msra.mxu0 0.0
    %66 = vmatprep.subr.mxu0 0.0
    %67 = vmatpush1.msra.mxu0 0.0
    %68 = vmatprep.subr.mxu0 0.0
    %69 = vmatpush1.msra.mxu0 0.0
    %70 = vmatprep.subr.mxu0 0.0
    %71 = vmatpush1.msra.mxu0 0.0
    %72 = vmatprep.subr.mxu0 0.0
    %73 = vmatpush1.msra.mxu0 0.0
    %74 = vmatprep.subr.mxu0 0.0
    %75 = vmatpush1.msra.mxu0 0.0
    %76 = vmatprep.subr.mxu0 0.0
    %77 = vmatpush1.msra.mxu0 0.0
    %78 = vmatprep.subr.mxu0 0.0
    %79 = vmatpush1.msra.mxu0 0.0
    %80 = vmatprep.subr.mxu0 0.0
    %81 = vmatpush1.msra.mxu0 %v44
    %82 = vmatprep.subr.mxu0 0.0
    %83 = vmatpush1.msra.mxu0 %v43
    %84 = vmatprep.subr.mxu0 0.0
    %85 = vmatpush1.msra.mxu0 %v42
    %86 = vmatprep.subr.mxu0 0.0
    %87 = vmatpush1.msra.mxu0 %v41
    %88 = vmatprep.subr.mxu0 0.0
    %89 = vmatpush2.msra.mxu0 0.0
    %90 = vmatprep.subr.mxu0 0.0
    %91 = vmatpush2.msra.mxu0 0.0
    %92 = vmatprep.subr.mxu0 0.0
    %93 = vmatpush2.msra.mxu0 0.0
    %94 = vmatprep.subr.mxu0 0.0
    %95 = vmatpush2.msra.mxu0 0.0
    %96 = vmatprep.subr.mxu0 0.0
    %97 = vmatpush2.msra.mxu0 0.0
    %98 = vmatprep.subr.mxu0 0.0
    %99 = vmatpush2.msra.mxu0 0.0
    %100 = vmatprep.subr.mxu0 0.0
    %101 = vmatpush2.msra.mxu0 0.0
    %102 = vmatprep.subr.mxu0 0.0
    %103 = vmatpush2.msra.mxu0 0.0
    %104 = vmatprep.subr.mxu0 0.0
    %105 = vmatpush2.msra.mxu0 0.0
    %106 = vmatprep.subr.mxu0 0.0
    %107 = vmatpush2.msra.mxu0 0.0
    %108 = vmatprep.subr.mxu0 0.0
    %109 = vmatpush2.msra.mxu0 0.0
    %110 = vmatprep.subr.mxu0 0.0
    %111 = vmatpush2.msra.mxu0 0.0
    %112 = vmatprep.subr.mxu0 0.0
    %113 = vmatpush2.msra.mxu0 0.0
    %114 = vmatprep.subr.mxu0 0.0
    %115 = vmatpush2.msra.mxu0 0.0
    %116 = vmatprep.subr.mxu0 0.0
    %117 = vmatpush2.msra.mxu0 0.0
    %118 = vmatprep.subr.mxu0 0.0
    %119 = vmatpush2.msra.mxu0 0.0
    %120 = vmatprep.mubr.f32.mxu0 0.0
    %121 = vmatmul.mubr.f32.gmra.mxu0 %v54
    %v122 = vpop.f32.mrf.mxu0
    %v123 = vadd.f32 %v50, %v122
    %v124 = vpop.f32.mrf.mxu0
    %125 = vdwg.mxu0
    %v126 = vld [vmem:[%s4] sm:$0xff]
    %v127 = vld [vmem:[%s4 + $0x8] sm:$0xff]
    %v128 = vld [vmem:[%s4 + $0x10] sm:$0xff]
    %v129 = vld [vmem:[%s4 + $0x18] sm:$0xff]
    %v130 = vld [vmem:[%s5] sm:$0xff]
    %v131 = vld [vmem:[%s5 + $0x8] sm:$0xff]
    %v132 = vld [vmem:[%s5 + $0x10] sm:$0xff]
    %v133 = vld [vmem:[%s5 + $0x18] sm:$0xff]
    %v135 = vsel %vm52, %v123, 0
    %137 = vmatprep.subr.mxu0 0.0
    %138 = vmatpush1.msra.mxu0 0.0
    %139 = vmatprep.subr.mxu0 0.0
    %140 = vmatpush1.msra.mxu0 0.0
    %141 = vmatprep.subr.mxu0 0.0
    %142 = vmatpush1.msra.mxu0 0.0
    %143 = vmatprep.subr.mxu0 0.0
    %144 = vmatpush1.msra.mxu0 0.0
    %145 = vmatprep.subr.mxu0 0.0
    %146 = vmatpush1.msra.mxu0 0.0
    %147 = vmatprep.subr.mxu0 0.0
    %148 = vmatpush1.msra.mxu0 0.0
    %149 = vmatprep.subr.mxu0 0.0
    %150 = vmatpush1.msra.mxu0 0.0
    %151 = vmatprep.subr.mxu0 0.0
    %152 = vmatpush1.msra.mxu0 0.0
    %153 = vmatprep.subr.mxu0 0.0
    %154 = vmatpush1.msra.mxu0 0.0
    %155 = vmatprep.subr.mxu0 0.0
    %156 = vmatpush1.msra.mxu0 0.0
    %157 = vmatprep.subr.mxu0 0.0
    %158 = vmatpush1.msra.mxu0 0.0
    %159 = vmatprep.subr.mxu0 0.0
    %160 = vmatpush1.msra.mxu0 0.0
    %161 = vmatprep.subr.mxu0 0.0
    %162 = vmatpush1.msra.mxu0 %v133
    %163 = vmatprep.subr.mxu0 0.0
    %164 = vmatpush1.msra.mxu0 %v132
    %165 = vmatprep.subr.mxu0 0.0
    %166 = vmatpush1.msra.mxu0 %v131
    %167 = vmatprep.subr.mxu0 0.0
    %168 = vmatpush1.msra.mxu0 %v130
    %169 = vmatprep.subr.mxu0 0.0
    %170 = vmatpush2.msra.mxu0 0.0
    %171 = vmatprep.subr.mxu0 0.0
    %172 = vmatpush2.msra.mxu0 0.0
    %173 = vmatprep.subr.mxu0 0.0
    %174 = vmatpush2.msra.mxu0 0.0
    %175 = vmatprep.subr.mxu0 0.0
    %176 = vmatpush2.msra.mxu0 0.0
    %177 = vmatprep.subr.mxu0 0.0
    %178 = vmatpush2.msra.mxu0 0.0
    %179 = vmatprep.subr.mxu0 0.0
    %180 = vmatpush2.msra.mxu0 0.0
    %181 = vmatprep.subr.mxu0 0.0
    %182 = vmatpush2.msra.mxu0 0.0
    %183 = vmatprep.subr.mxu0 0.0
    %184 = vmatpush2.msra.mxu0 0.0
    %185 = vmatprep.subr.mxu0 0.0
    %186 = vmatpush2.msra.mxu0 0.0
    %187 = vmatprep.subr.mxu0 0.0
    %188 = vmatpush2.msra.mxu0 0.0
    %189 = vmatprep.subr.mxu0 0.0
    %190 = vmatpush2.msra.mxu0 0.0
    %191 = vmatprep.subr.mxu0 0.0
    %192 = vmatpush2.msra.mxu0 0.0
    %193 = vmatprep.subr.mxu0 0.0
    %194 = vmatpush2.msra.mxu0 0.0
    %195 = vmatprep.subr.mxu0 0.0
    %196 = vmatpush2.msra.mxu0 0.0
    %197 = vmatprep.subr.mxu0 0.0
    %198 = vmatpush2.msra.mxu0 0.0
    %199 = vmatprep.subr.mxu0 0.0
    %200 = vmatpush2.msra.mxu0 0.0
    %201 = vmatprep.mubr.f32.mxu0 0.0
    %202 = vmatmul.mubr.f32.gmra.mxu0 %v135
    %v203 = vpop.f32.mrf.mxu0
    %v204 = vadd.f32 0.0, %v203
    %v205 = vpop.f32.mrf.mxu0
    %206 = vdwg.mxu0
    %v208 = vsel %vm52, %v39, 0
    %210 = vmatprep.subr.mxu0 0.0
    %211 = vmatpush1.msra.mxu0 0.0
    %212 = vmatprep.subr.mxu0 0.0
    %213 = vmatpush1.msra.mxu0 0.0
    %214 = vmatprep.subr.mxu0 0.0
    %215 = vmatpush1.msra.mxu0 0.0
    %216 = vmatprep.subr.mxu0 0.0
    %217 = vmatpush1.msra.mxu0 0.0
    %218 = vmatprep.subr.mxu0 0.0
    %219 = vmatpush1.msra.mxu0 0.0
    %220 = vmatprep.subr.mxu0 0.0
    %221 = vmatpush1.msra.mxu0 0.0
    %222 = vmatprep.subr.mxu0 0.0
    %223 = vmatpush1.msra.mxu0 0.0
    %224 = vmatprep.subr.mxu0 0.0
    %225 = vmatpush1.msra.mxu0 0.0
    %226 = vmatprep.subr.mxu0 0.0
    %227 = vmatpush1.msra.mxu0 0.0
    %228 = vmatprep.subr.mxu0 0.0
    %229 = vmatpush1.msra.mxu0 0.0
    %230 = vmatprep.subr.mxu0 0.0
    %231 = vmatpush1.msra.mxu0 0.0
    %232 = vmatprep.subr.mxu0 0.0
    %233 = vmatpush1.msra.mxu0 0.0
    %234 = vmatprep.subr.mxu0 0.0
    %235 = vmatpush1.msra.mxu0 %v129
    %236 = vmatprep.subr.mxu0 0.0
    %237 = vmatpush1.msra.mxu0 %v128
    %238 = vmatprep.subr.mxu0 0.0
    %239 = vmatpush1.msra.mxu0 %v127
    %240 = vmatprep.subr.mxu0 0.0
    %241 = vmatpush1.msra.mxu0 %v126
    %242 = vmatprep.subr.mxu0 0.0
    %243 = vmatpush2.msra.mxu0 0.0
    %244 = vmatprep.subr.mxu0 0.0
    %245 = vmatpush2.msra.mxu0 0.0
    %246 = vmatprep.subr.mxu0 0.0
    %247 = vmatpush2.msra.mxu0 0.0
    %248 = vmatprep.subr.mxu0 0.0
    %249 = vmatpush2.msra.mxu0 0.0
    %250 = vmatprep.subr.mxu0 0.0
    %251 = vmatpush2.msra.mxu0 0.0
    %252 = vmatprep.subr.mxu0 0.0
    %253 = vmatpush2.msra.mxu0 0.0
    %254 = vmatprep.subr.mxu0 0.0
    %255 = vmatpush2.msra.mxu0 0.0
    %256 = vmatprep.subr.mxu0 0.0
    %257 = vmatpush2.msra.mxu0 0.0
    %258 = vmatprep.subr.mxu0 0.0
    %259 = vmatpush2.msra.mxu0 0.0
    %260 = vmatprep.subr.mxu0 0.0
    %261 = vmatpush2.msra.mxu0 0.0
    %262 = vmatprep.subr.mxu0 0.0
    %263 = vmatpush2.msra.mxu0 0.0
    %264 = vmatprep.subr.mxu0 0.0
    %265 = vmatpush2.msra.mxu0 0.0
    %266 = vmatprep.subr.mxu0 0.0
    %267 = vmatpush2.msra.mxu0 0.0
    %268 = vmatprep.subr.mxu0 0.0
    %269 = vmatpush2.msra.mxu0 0.0
    %270 = vmatprep.subr.mxu0 0.0
    %271 = vmatpush2.msra.mxu0 0.0
    %272 = vmatprep.subr.mxu0 0.0
    %273 = vmatpush2.msra.mxu0 0.0
    %274 = vmatprep.mubr.f32.mxu0 0.0
    %275 = vmatmul.mubr.f32.gmra.mxu0 %v208
    %v276 = vpop.f32.mrf.mxu0
    %v277 = vadd.f32 %v204, %v276
    %v278 = vpop.f32.mrf.mxu0
    %279 = vdwg.mxu0
    %v280 = vld [vmem:[%s6] sm:$0x1]
    %v282 = vlaneseq
    %v283 = vshrl.u32 %v282, 7
    %v284 = vsub.s32 0, %v283
    %v285 = vrot.slane %v280, %v284
    %v287 = vadd.f32 %v277, %v285
    %v288 = vmax.f32 %v287, 0.0
    %v289 = vld [vmem:[%s7] sm:$0xff]
    %v290 = vld [vmem:[%s7 + $0x8] sm:$0xff]
    %v291 = vld [vmem:[%s7 + $0x10] sm:$0xff]
    %v292 = vld [vmem:[%s7 + $0x18] sm:$0xff]
    %v293 = vld [vmem:[%s7 + $0x20] sm:$0xff]
    %v294 = vld [vmem:[%s7 + $0x28] sm:$0xff]
    %v295 = vld [vmem:[%s7 + $0x30] sm:$0xff]
    %v296 = vld [vmem:[%s7 + $0x38] sm:$0xff]
    %v297 = vld [vmem:[%s8] sm:$0x1]
    %v299 = vlaneseq
    %v300 = vshrl.u32 %v299, 7
    %v301 = vsub.s32 0, %v300
    %v302 = vrot.slane %v297, %v301
    %vm304 = vcmask 523264
    %v306 = vsel %vm304, %v288, 0
    %308 = vmatprep.subr.mxu0 0.0
    %309 = vmatpush1.msra.mxu0 0.0
    %310 = vmatprep.subr.mxu0 0.0
    %311 = vmatpush1.msra.mxu0 0.0
    %312 = vmatprep.subr.mxu0 0.0
    %313 = vmatpush1.msra.mxu0 0.0
    %314 = vmatprep.subr.mxu0 0.0
    %315 = vmatpush1.msra.mxu0 0.0
    %316 = vmatprep.subr.mxu0 0.0
    %317 = vmatpush1.msra.mxu0 0.0
    %318 = vmatprep.subr.mxu0 0.0
    %319 = vmatpush1.msra.mxu0 0.0
    %320 = vmatprep.subr.mxu0 0.0
    %321 = vmatpush1.msra.mxu0 0.0
    %322 = vmatprep.subr.mxu0 0.0
    %323 = vmatpush1.msra.mxu0 0.0
    %324 = vmatprep.subr.mxu0 0.0
    %325 = vmatpush1.msra.mxu0 %v296
    %326 = vmatprep.subr.mxu0 0.0
    %327 = vmatpush1.msra.mxu0 %v295
    %328 = vmatprep.subr.mxu0 0.0
    %329 = vmatpush1.msra.mxu0 %v294
    %330 = vmatprep.subr.mxu0 0.0
    %331 = vmatpush1.msra.mxu0 %v293
    %332 = vmatprep.subr.mxu0 0.0
    %333 = vmatpush1.msra.mxu0 %v292
    %334 = vmatprep.subr.mxu0 0.0
    %335 = vmatpush1.msra.mxu0 %v291
    %336 = vmatprep.subr.mxu0 0.0
    %337 = vmatpush1.msra.mxu0 %v290
    %338 = vmatprep.subr.mxu0 0.0
    %339 = vmatpush1.msra.mxu0 %v289
    %340 = vmatprep.subr.mxu0 0.0
    %341 = vmatpush2.msra.mxu0 0.0
    %342 = vmatprep.subr.mxu0 0.0
    %343 = vmatpush2.msra.mxu0 0.0
    %344 = vmatprep.subr.mxu0 0.0
    %345 = vmatpush2.msra.mxu0 0.0
    %346 = vmatprep.subr.mxu0 0.0
    %347 = vmatpush2.msra.mxu0 0.0
    %348 = vmatprep.subr.mxu0 0.0
    %349 = vmatpush2.msra.mxu0 0.0
    %350 = vmatprep.subr.mxu0 0.0
    %351 = vmatpush2.msra.mxu0 0.0
    %352 = vmatprep.subr.mxu0 0.0
    %353 = vmatpush2.msra.mxu0 0.0
    %354 = vmatprep.subr.mxu0 0.0
    %355 = vmatpush2.msra.mxu0 0.0
    %356 = vmatprep.subr.mxu0 0.0
    %357 = vmatpush2.msra.mxu0 0.0
    %358 = vmatprep.subr.mxu0 0.0
    %359 = vmatpush2.msra.mxu0 0.0
    %360 = vmatprep.subr.mxu0 0.0
    %361 = vmatpush2.msra.mxu0 0.0
    %362 = vmatprep.subr.mxu0 0.0
    %363 = vmatpush2.msra.mxu0 0.0
    %364 = vmatprep.subr.mxu0 0.0
    %365 = vmatpush2.msra.mxu0 0.0
    %366 = vmatprep.subr.mxu0 0.0
    %367 = vmatpush2.msra.mxu0 0.0
    %368 = vmatprep.subr.mxu0 0.0
    %369 = vmatpush2.msra.mxu0 0.0
    %370 = vmatprep.subr.mxu0 0.0
    %371 = vmatpush2.msra.mxu0 0.0
    %372 = vmatprep.mubr.f32.mxu0 0.0
    %373 = vmatmul.mubr.f32.gmra.mxu0 %v306
    %v374 = vpop.f32.mrf.mxu0
    %v375 = vadd.f32 %v302, %v374
    %v376 = vpop.f32.mrf.mxu0
    %377 = vdwg.mxu0
    %v378 = vmax.f32 %v375, 0.0
    %v379 = vld [vmem:[%s9] sm:$0xff]
    %v380 = vld [vmem:[%s9 + $0x8] sm:$0xff]
    %v381 = vld [vmem:[%s9 + $0x10] sm:$0xff]
    %v382 = vld [vmem:[%s9 + $0x18] sm:$0xff]
    %v383 = vld [vmem:[%s10] sm:$0x1]
    %v385 = vlaneseq
    %v386 = vshrl.u32 %v385, 7
    %v387 = vsub.s32 0, %v386
    %v388 = vrot.slane %v383, %v387
    %v391 = vsel %vm52, %v378, 0
    %393 = vmatprep.subr.mxu0 0.0
    %394 = vmatpush1.msra.mxu0 0.0
    %395 = vmatprep.subr.mxu0 0.0
    %396 = vmatpush1.msra.mxu0 0.0
    %397 = vmatprep.subr.mxu0 0.0
    %398 = vmatpush1.msra.mxu0 0.0
    %399 = vmatprep.subr.mxu0 0.0
    %400 = vmatpush1.msra.mxu0 0.0
    %401 = vmatprep.subr.mxu0 0.0
    %402 = vmatpush1.msra.mxu0 0.0
    %403 = vmatprep.subr.mxu0 0.0
    %404 = vmatpush1.msra.mxu0 0.0
    %405 = vmatprep.subr.mxu0 0.0
    %406 = vmatpush1.msra.mxu0 0.0
    %407 = vmatprep.subr.mxu0 0.0
    %408 = vmatpush1.msra.mxu0 0.0
    %409 = vmatprep.subr.mxu0 0.0
    %410 = vmatpush1.msra.mxu0 0.0
    %411 = vmatprep.subr.mxu0 0.0
    %412 = vmatpush1.msra.mxu0 0.0
    %413 = vmatprep.subr.mxu0 0.0
    %414 = vmatpush1.msra.mxu0 0.0
    %415 = vmatprep.subr.mxu0 0.0
    %416 = vmatpush1.msra.mxu0 0.0
    %417 = vmatprep.subr.mxu0 0.0
    %418 = vmatpush1.msra.mxu0 %v382
    %419 = vmatprep.subr.mxu0 0.0
    %420 = vmatpush1.msra.mxu0 %v381
    %421 = vmatprep.subr.mxu0 0.0
    %422 = vmatpush1.msra.mxu0 %v380
    %423 = vmatprep.subr.mxu0 0.0
    %424 = vmatpush1.msra.mxu0 %v379
    %425 = vmatprep.subr.mxu0 0.0
    %426 = vmatpush2.msra.mxu0 0.0
    %427 = vmatprep.subr.mxu0 0.0
    %428 = vmatpush2.msra.mxu0 0.0
    %429 = vmatprep.subr.mxu0 0.0
    %430 = vmatpush2.msra.mxu0 0.0
    %431 = vmatprep.subr.mxu0 0.0
    %432 = vmatpush2.msra.mxu0 0.0
    %433 = vmatprep.subr.mxu0 0.0
    %434 = vmatpush2.msra.mxu0 0.0
    %435 = vmatprep.subr.mxu0 0.0
    %436 = vmatpush2.msra.mxu0 0.0
    %437 = vmatprep.subr.mxu0 0.0
    %438 = vmatpush2.msra.mxu0 0.0
    %439 = vmatprep.subr.mxu0 0.0
    %440 = vmatpush2.msra.mxu0 0.0
    %441 = vmatprep.subr.mxu0 0.0
    %442 = vmatpush2.msra.mxu0 0.0
    %443 = vmatprep.subr.mxu0 0.0
    %444 = vmatpush2.msra.mxu0 0.0
    %445 = vmatprep.subr.mxu0 0.0
    %446 = vmatpush2.msra.mxu0 0.0
    %447 = vmatprep.subr.mxu0 0.0
    %448 = vmatpush2.msra.mxu0 0.0
    %449 = vmatprep.subr.mxu0 0.0
    %450 = vmatpush2.msra.mxu0 0.0
    %451 = vmatprep.subr.mxu0 0.0
    %452 = vmatpush2.msra.mxu0 0.0
    %453 = vmatprep.subr.mxu0 0.0
    %454 = vmatpush2.msra.mxu0 0.0
    %455 = vmatprep.subr.mxu0 0.0
    %456 = vmatpush2.msra.mxu0 0.0
    %457 = vmatprep.mubr.f32.mxu0 0.0
    %458 = vmatmul.mubr.f32.gmra.mxu0 %v391
    %v459 = vpop.f32.mrf.mxu0
    %v460 = vadd.f32 %v388, %v459
    %v461 = vpop.f32.mrf.mxu0
    %462 = vdwg.mxu0
    %vm463 = vcmask 64512
    %464 = vst.msk [vmem:[#allocation2] sm:$0xff] %vm463, %v460
    // Predicated region
    $region46: #{mlp_forward.1} parent=1 // pred_check
      _
    $region47: #{mlp_forward.1} parent=1 // pred_check_branch
      %466 = sbr.rel (0) target = $region49
    $region48: #{mlp_forward.1} parent=1 // pred_region
      %s468 = ssub.s32 128, 128
      %469 = vsyncadd [#allocation3], %s468
      %s471 = sshll.u32 [#allocation2], 4
      %s472 = int_to_ptr.vmem [resolvable:$true] %s471
      %474 = dma.vmem_to_hbm [thread:$0]  %s472, 128, %s11, [#allocation3]
    $region49: #{mlp_forward.1} parent=1 // pred_fallthru
      _
    // Predicated region
    $region50: #{mlp_forward.1} parent=1 // pred_check
      _
    $region51: #{mlp_forward.1} parent=1 // pred_check_branch
      %476 = sbr.rel (0) target = $region53
    $region52: #{mlp_forward.1} parent=1 // pred_region
      %477 = dma.done [#allocation3], 128
    $region53: #{mlp_forward.1} parent=1 // pred_fallthru
      _
    %478 = vsyncpa [#allocation3], 1

</llo_original>
